<compile_context>
chip_gen: v7x
topology: tpu7x:2x2x1
jax: 0.10.0
libtpu: 0.0.40
codegen_flags: <defaults>
</compile_context>

<pallas_src>
from functools import partial

import jax
import jax.numpy as jnp
from jax.experimental import pallas as pl
from jax.experimental.pallas import tpu as pltpu


# ----------------------------- Pallas kernel --------------------------------
def _cond_conv_kernel(*refs, F, hl, hr, up, has_halo, has_res):
    """One (batch, time-tile) step of a conditional (up-)conv block.

    refs (in order):
      x_ref    : (1, TTh, C_in)        auto-pipelined body tile
      halo_ref : (1, hl+hr, C_in)      [optional] pre-gathered halo rows
      w_ref    : (F*C_in, up*C_out)    folded conv weight (taps + phases fused)
      b_ref    : (1, 1, up*C_out)      fused bias (conv bias + spk cond), f32
      res_ref  : (1, TTh, C_out)       [optional] residual tile
      o_ref    : (1, TTh, up*C_out)    phase-packed output tile
    """
    it = iter(refs)
    x_ref = next(it)
    halo_ref = next(it) if has_halo else None
    w_ref = next(it)
    b_ref = next(it)
    res_ref = next(it) if has_res else None
    o_ref = next(it)

    body = x_ref[0]                                   # (TTh, C_in)
    TTh = body.shape[0]

    # Halo'd window (TTh + hl + hr, C_in).  Halo rows arrive via a tiny
    # auto-pipelined side input, so nothing here waits on an exposed DMA.
    if has_halo:
        halo = halo_ref[0]                            # (hl+hr, C_in)
        parts = []
        if hl:
            parts.append(halo[:hl])
        parts.append(body)
        if hr:
            parts.append(halo[hl:hl + hr])
        win = jnp.concatenate(parts, axis=0) if len(parts) > 1 else body
    else:
        win = body

    # Single fused contraction: all K taps and all `up` phases in one matmul.
    if F == 1:
        lhs = win
    else:
        lhs = jnp.concatenate([win[d:d + TTh] for d in range(F)], axis=1)

    acc = jnp.dot(lhs, w_ref[...], preferred_element_type=jnp.float32)
    y = jnp.maximum(acc + b_ref[0], 0.0)              # matmul + bias + ReLU in f32
    y = y.astype(o_ref.dtype)
    if has_res:
        res = res_ref[0]                              # (TTh, C_out), compute dtype
        if up > 1:                                    # phase-packed broadcast of the
            res = jnp.concatenate([res] * up, axis=-1)  # nearest-upsampled residual
        y = y + res                                   # post-downcast add (cheap VALU)
    o_ref[0] = y                                      # one lane-dense store


# ------------------------------ host helpers --------------------------------
def _vmem_capacity_bytes():
    try:
        cap = getattr(pltpu.get_tpu_info(), "vmem_capacity_bytes", None)
        if cap:
            return int(cap)
    except Exception:
        pass
    return 64 * 1024 * 1024        # conservative fallback (safe on v7x too)


def _fold_weight(w, up, pad_l, hl, F):
    """Fold conv taps + nearest-upsample phases into one (F*C_in, up*C_out)
    matrix:  out[up*m + p] = sum_d  x[m + d - hl] @ Wf[d, :, p, :]."""
    K, C_in, C_out = w.shape
    wf = jnp.zeros((F, C_in, up, C_out), jnp.float32)
    for p in range(up):
        for k in range(K):
            d = (p - pad_l + k) // up + hl            # taps on the same frame sum
            wf = wf.at[d, :, p, :].add(w[k].astype(jnp.float32))
    return wf.reshape(F * C_in, up * C_out)


def _choose_t_tile(T_in, C_in, C_out, F, up, itemsize, has_res, *,
                   target_out, vmem_budget, want_split, min_tile):
    """Largest input-frame tile TTh dividing T_in that (a) is sublane aligned
    (16 for bf16, 8 for f32) unless it is the whole sequence, (b) keeps the
    per-tile VMEM working set under budget, (c) splits the time axis when
    B == 1 so both v7x TensorCores get work, (d) covers the conv halo."""
    sub = 16 if itemsize < 4 else 8
    cands = [d for d in range(1, T_in + 1)
             if T_in % d == 0 and d >= min_tile and (d == T_in or d % sub == 0)]
    if not cands:
        cands = [T_in]

    def est(tth):
        body = 2 * tth * C_in * itemsize
        halo = 2 * (F - 1) * C_in * itemsize
        outb = 2 * tth * up * C_out * itemsize
        resb = 2 * tth * C_out * itemsize if has_res else 0
        wgt = 2 * F * C_in * up * C_out * itemsize
        lhs = tth * F * C_in * itemsize
        acc = tth * up * C_out * 4
        return body + halo + outb + resb + wgt + lhs + acc

    pool = [d for d in cands if est(d) <= vmem_budget] or [min(cands)]
    if want_split:
        split = [d for d in pool if T_in // d >= 2]
        if split:
            pool = split
    target_in = max(1, target_out // up)
    capped = [d for d in pool if d <= target_in]
    return max(capped) if capped else min(pool)


# ------------------------------ host wrapper ---------------------------------
def cond_conv_block(x, w, bias, *, up=1, residual=None, t_tile_out=2048):
    """ReLU(conv1d_same(nearest_upsample(x, up)) + bias) [+ residual].

    x        : (B, T_in, C_in)       activations (compute dtype)
    w        : (K, C_in, C_out)      conv taps (any float dtype)
    bias     : (B, C_out) float32    conv bias + speaker conditioning, fused
    residual : (B, T_in, C_out) or None; added per INPUT frame (implicitly
               nearest-upsampled by `up`) AFTER the ReLU.
    returns  : (B, up*T_in, C_out)
    """
    B, T_in, C_in = x.shape
    K, _, C_out = w.shape
    assert K % 2 == 1, "kernel_size must be odd (matches Conv1d(padding=K//2) 'same')"
    pad_l = K // 2
    pad_r = K - 1 - pad_l
    hl = -(-pad_l // up)                 # halo (input frames) on the left
    hr = -(-pad_r // up)                 # halo on the right
    F = hl + hr + 1                      # distinct input frames per output frame
    assert T_in >= max(hl, hr), "sequence shorter than the conv halo"

    itemsize = jnp.dtype(x.dtype).itemsize
    vmem_cap = _vmem_capacity_bytes()
    # Generation-aware budget: ~96 MiB scoped limit on 128-MiB parts
    # (v5e/v6e), ~48 MiB on 64-MiB parts (v7x); tiles stay well under it.
    vmem_limit = min((3 * vmem_cap) // 4, 96 * 1024 * 1024)
    tile_budget = max(vmem_limit - 16 * 1024 * 1024, vmem_limit // 2)

    TTh = _choose_t_tile(
        T_in, C_in, C_out, F, up, itemsize, residual is not None,
        target_out=t_tile_out, vmem_budget=tile_budget,
        want_split=(B == 1), min_tile=max(hl, hr, 1))
    NT = T_in // TTh
    HALO = hl + hr

    # Fold taps + phases into one weight, phase-pack the bias.
    wf = _fold_weight(w, up, pad_l, hl, F).astype(x.dtype)
    bias_p = jnp.tile(bias.astype(jnp.float32), (1, up)).reshape(B, 1, up * C_out)

    in_specs = [pl.BlockSpec((1, TTh, C_in), lambda b, i: (b, i, 0))]
    inputs = [x]
    if HALO > 0:
        # Pre-gather the hl+hr halo rows of every tile (zero-filled at the
        # sequence edges) into a tiny side array: all streams auto-pipelined,
        # no manual DMA in the kernel.
        x_pad = jnp.pad(x, ((0, 0), (hl, TTh), (0, 0)))
        left = x_pad[:, :NT * TTh].reshape(B, NT, TTh, C_in)[:, :, :hl]
        right = x_pad[:, hl + TTh: hl + (NT + 1) * TTh] \
            .reshape(B, NT, TTh, C_in)[:, :, :hr]
        halo = jnp.concatenate([left, right], axis=2).reshape(B * NT, HALO, C_in)
        in_specs.append(pl.BlockSpec((1, HALO, C_in),
                                     lambda b, i: (b * NT + i, 0, 0)))
        inputs.append(halo)
    in_specs.append(pl.BlockSpec((F * C_in, up * C_out), lambda b, i: (0, 0)))
    inputs.append(wf)
    in_specs.append(pl.BlockSpec((1, 1, up * C_out), lambda b, i: (b, 0, 0)))
    inputs.append(bias_p)
    if residual is not None:
        in_specs.append(pl.BlockSpec((1, TTh, C_out), lambda b, i: (b, i, 0)))
        inputs.append(residual)

    kernel = partial(_cond_conv_kernel, F=F, hl=hl, hr=hr, up=up,
                     has_halo=HALO > 0, has_res=residual is not None)

    out = pl.pallas_call(
        kernel,
        out_shape=jax.ShapeDtypeStruct((B, T_in, up * C_out), x.dtype),
        grid_spec=pltpu.PrefetchScalarGridSpec(
            num_scalar_prefetch=0,
            grid=(B, NT),
            in_specs=in_specs,
            out_specs=pl.BlockSpec((1, TTh, up * C_out), lambda b, i: (b, i, 0)),
        ),
        compiler_params=pltpu.CompilerParams(
            dimension_semantics=("parallel", "parallel"),
            vmem_limit_bytes=vmem_limit,
        ),
    )(*inputs)
    # Phase-packed (B, T_in, up*C_out) -> (B, up*T_in, C_out): free reshape.
    return out.reshape(B, T_in * up, C_out)


def dec_conv_module(x, spk_emb, params, up_scale=2, *,
                    compute_dtype=jnp.bfloat16, t_tile_out=2048):
    """Forward pass of DecConvModule.  x: (B, T, C), spk_emb: (B, d_style)."""
    out_dtype = x.dtype
    xc = x.astype(compute_dtype)
    spk = spk_emb.astype(jnp.float32)

    def prep_bias(name):
        w, b, cw, cb = params[name]
        # Conv bias + speaker conditioning fused into one per-batch bias (f32);
        # the degenerate 1-row matmul never enters the kernel.
        bias = (b.astype(jnp.float32)[None, :]
                + spk @ cw.astype(jnp.float32)
                + cb.astype(jnp.float32)[None, :])
        return w, bias

    w1, b1 = prep_bias("conv1")
    w2, b2 = prep_bias("conv2")
    w3, b3 = prep_bias("conv3")
    w4, b4 = prep_bias("conv4")

    h = cond_conv_block(xc, w1, b1, t_tile_out=t_tile_out)                  # relu(conv1(x))
    hid = cond_conv_block(h, w2, b2, residual=xc, t_tile_out=t_tile_out)    # x + relu(conv2(.))
    h3 = cond_conv_block(hid, w3, b3, t_tile_out=t_tile_out)                # relu(conv3(hid))
    out = cond_conv_block(h3, w4, b4, up=up_scale, residual=hid,            # UpConv + upsampled
                          t_tile_out=t_tile_out)                            # residual, fused
    return out.astype(out_dtype)


# --------------------------- pure-JAX reference -----------------------------
def _conv_block_ref(x, spk_emb, w, b, cond_w, cond_b):
    B, T, C_in = x.shape
    K = w.shape[0]
    pad = K // 2
    x_pad = jnp.pad(x, ((0, 0), (pad, K - 1 - pad), (0, 0)))
    acc = sum(jnp.einsum("btc,cd->btd", x_pad[:, k:k + T, :], w[k]) for k in range(K))
    cond = spk_emb @ cond_w + cond_b
    return jnp.maximum(acc + b + cond[:, None, :], 0.0)


def _dec_conv_module_ref(x, spk_emb, params, up_scale=2):
    h = _conv_block_ref(x, spk_emb, *params["conv1"])
    h = _conv_block_ref(h, spk_emb, *params["conv2"])
    hid = x + h
    h3 = _conv_block_ref(hid, spk_emb, *params["conv3"])
    h3_up = jnp.repeat(h3, up_scale, axis=1) if up_scale != 1 else h3
    out = _conv_block_ref(h3_up, spk_emb, *params["conv4"])
    res = jnp.repeat(hid, up_scale, axis=1) if up_scale != 1 else hid
    return out + res


# ------------------------------- parameters ---------------------------------
def init_params(key, d_hid, d_style, kernel_size):
    params = {}
    for name in ("conv1", "conv2", "conv3", "conv4"):
        key, k1, k2, k3, k4 = jax.random.split(key, 5)
        w = jax.random.normal(k1, (kernel_size, d_hid, d_hid), jnp.float32) * 0.1
        b = jax.random.normal(k2, (d_hid,), jnp.float32) * 0.1
        cw = jax.random.normal(k3, (d_style, d_hid), jnp.float32) * 0.1
        cb = jax.random.normal(k4, (d_hid,), jnp.float32) * 0.1
        params[name] = (w, b, cw, cb)
    return params


if __name__ == "__main__":
    B, T = 2, 32
    d_hid, d_style, kernel_size, up_scale = 32, 16, 3, 2

    key = jax.random.PRNGKey(0)
    key, kx, ks, kp = jax.random.split(key, 4)
    x = jax.random.normal(kx, (B, T, d_hid), jnp.float32)
    spk_emb = jax.random.normal(ks, (B, d_style), jnp.float32)
    params = init_params(kp, d_hid, d_style, kernel_size)

    ref = _dec_conv_module_ref(x, spk_emb, params, up_scale=up_scale)

    # f32 path with small time tiles: exercises the multi-tile grid and the
    # edge / interior halo gathering for both up=1 and up=2 blocks.
    out_f32 = dec_conv_module(x, spk_emb, params, up_scale=up_scale,
                              compute_dtype=jnp.float32, t_tile_out=16)
    out_f32 = jax.block_until_ready(out_f32)
    assert out_f32.shape == (B, T * up_scale, d_hid), out_f32.shape
    assert jnp.allclose(out_f32, ref, atol=2e-3, rtol=2e-3), "f32 mismatch vs reference"

    # bf16 path (production default): single tile, folded bf16 weights.
    out_bf16 = dec_conv_module(x, spk_emb, params, up_scale=up_scale,
                               compute_dtype=jnp.bfloat16)
    out_bf16 = jax.block_until_ready(out_bf16)
    assert out_bf16.shape == (B, T * up_scale, d_hid), out_bf16.shape
    assert jnp.allclose(out_bf16, ref, atol=2.5e-1, rtol=1e-1), "bf16 mismatch vs reference"

    print("KERNEL_OK")
</pallas_src>

<mosaic_0001>
module attributes {stable_mosaic.version = 11 : i64} {
  func.func @_cond_conv_kernel(%arg0: i32, %arg1: i32, %arg2: memref<1x16x32xf32, #tpu.memory_space<vmem>>, %arg3: memref<1x2x32xf32, #tpu.memory_space<vmem>>, %arg4: memref<96x32xf32, #tpu.memory_space<vmem>>, %arg5: memref<1x1x32xf32, #tpu.memory_space<vmem>>, %arg6: memref<1x16x32xf32, #tpu.memory_space<vmem>>) attributes {dimension_semantics = [#tpu.dimension_semantics<parallel>, #tpu.dimension_semantics<parallel>], iteration_bounds = array<i64: 2, 2>, scalar_prefetch = 0 : i64, scratch_operands = 0 : i64, tpu.core_type = #tpu.core_type<tc>, window_params = [{transform_indices = @transform_0, window_bounds = array<i64: 1, 16, 32>}, {transform_indices = @transform_1, window_bounds = array<i64: 1, 2, 32>}, {pipeline_mode = #tpu.pipeline_mode<synchronous>, transform_indices = @transform_2, window_bounds = array<i64: 96, 32>}, {transform_indices = @transform_3, window_bounds = array<i64: 1, 1, 32>}, {transform_indices = @transform_4, window_bounds = array<i64: 1, 16, 32>}]} {
    %c0 = arith.constant 0 : index
    %c0_0 = arith.constant 0 : index
    %c0_1 = arith.constant 0 : index
    %0 = vector.load %arg2[%c0, %c0_0, %c0_1] : memref<1x16x32xf32, #tpu.memory_space<vmem>>, vector<1x16x32xf32>
    %1 = vector.shape_cast %0 : vector<1x16x32xf32> to vector<16x32xf32>
    %c0_2 = arith.constant 0 : index
    %c0_3 = arith.constant 0 : index
    %c0_4 = arith.constant 0 : index
    %2 = vector.load %arg3[%c0_2, %c0_3, %c0_4] : memref<1x2x32xf32, #tpu.memory_space<vmem>>, vector<1x2x32xf32>
    %3 = vector.shape_cast %2 : vector<1x2x32xf32> to vector<2x32xf32>
    %4 = vector.extract_strided_slice %3 {offsets = [0, 0], sizes = [1, 32], strides = [1, 1]} : vector<2x32xf32> to vector<1x32xf32>
    %5 = vector.extract_strided_slice %3 {offsets = [1, 0], sizes = [1, 32], strides = [1, 1]} : vector<2x32xf32> to vector<1x32xf32>
    %6 = tpu.concatenate %4, %1, %5 in 0 : vector<1x32xf32>, vector<16x32xf32>, vector<1x32xf32> -> vector<18x32xf32>
    %7 = vector.extract_strided_slice %6 {offsets = [0, 0], sizes = [16, 32], strides = [1, 1]} : vector<18x32xf32> to vector<16x32xf32>
    %8 = vector.extract_strided_slice %6 {offsets = [1, 0], sizes = [16, 32], strides = [1, 1]} : vector<18x32xf32> to vector<16x32xf32>
    %9 = vector.extract_strided_slice %6 {offsets = [2, 0], sizes = [16, 32], strides = [1, 1]} : vector<18x32xf32> to vector<16x32xf32>
    %10 = tpu.concatenate %7, %8, %9 in 1 : vector<16x32xf32>, vector<16x32xf32>, vector<16x32xf32> -> vector<16x96xf32>
    %c0_5 = arith.constant 0 : index
    %c0_6 = arith.constant 0 : index
    %11 = vector.load %arg4[%c0_5, %c0_6] : memref<96x32xf32, #tpu.memory_space<vmem>>, vector<96x32xf32>
    %cst = arith.constant dense<0.000000e+00> : vector<16x32xf32>
    %12 = tpu.matmul %10, %11, %cst {dimension_numbers = #tpu.dot_dimension_numbers<[1], [0], [0], [1], [0, 0, 1, 1], [], []>} : vector<16x96xf32>, vector<96x32xf32>, vector<16x32xf32> -> vector<16x32xf32>
    %c0_7 = arith.constant 0 : index
    %c0_8 = arith.constant 0 : index
    %c0_9 = arith.constant 0 : index
    %13 = vector.load %arg5[%c0_7, %c0_8, %c0_9] : memref<1x1x32xf32, #tpu.memory_space<vmem>>, vector<1x1x32xf32>
    %14 = vector.shape_cast %13 : vector<1x1x32xf32> to vector<1x32xf32>
    %15 = vector.broadcast %14 : vector<1x32xf32> to vector<16x32xf32>
    %16 = arith.addf %12, %15 : vector<16x32xf32>
    %cst_10 = arith.constant 0.000000e+00 : f32
    %17 = vector.broadcast %cst_10 : f32 to vector<16x32xf32>
    %18 = arith.maximumf %16, %17 : vector<16x32xf32>
    %c0_11 = arith.constant 0 : index
    %c0_12 = arith.constant 0 : index
    %c0_13 = arith.constant 0 : index
    %19 = vector.load %arg6[%c0_11, %c0_12, %c0_13] : memref<1x16x32xf32, #tpu.memory_space<vmem>>, vector<1x16x32xf32>
    %20 = vector.shape_cast %19 : vector<1x16x32xf32> to vector<16x32xf32>
    %21 = vector.shape_cast %18 : vector<16x32xf32> to vector<1x16x32xf32>
    tpu.vector_store %arg6[%c0_11, %c0_12, %c0_13], %21 {strides = array<i32>} : memref<1x16x32xf32, #tpu.memory_space<vmem>>, vector<1x16x32xf32>,
    return
  }
  func.func @transform_0(%arg0: i32, %arg1: i32) -> (i32, i32, i32) {
    %c0_i32 = arith.constant 0 : i32
    %c0_i32_0 = arith.constant 0 : i32
    return %arg0, %arg1, %c0_i32 : i32, i32, i32
  }
  func.func @transform_1(%arg0: i32, %arg1: i32) -> (i32, i32, i32) {
    %c2_i32 = arith.constant 2 : i32
    %0 = arith.muli %arg0, %c2_i32 : i32
    %1 = arith.addi %0, %arg1 : i32
    %c0_i32 = arith.constant 0 : i32
    %c0_i32_0 = arith.constant 0 : i32
    %c0_i32_1 = arith.constant 0 : i32
    return %1, %c0_i32, %c0_i32_0 : i32, i32, i32
  }
  func.func @transform_2(%arg0: i32, %arg1: i32) -> (i32, i32) {
    %c0_i32 = arith.constant 0 : i32
    %c0_i32_0 = arith.constant 0 : i32
    %c0_i32_1 = arith.constant 0 : i32
    return %c0_i32, %c0_i32_0 : i32, i32
  }
  func.func @transform_3(%arg0: i32, %arg1: i32) -> (i32, i32, i32) {
    %c0_i32 = arith.constant 0 : i32
    %c0_i32_0 = arith.constant 0 : i32
    %c0_i32_1 = arith.constant 0 : i32
    return %arg0, %c0_i32, %c0_i32_0 : i32, i32, i32
  }
  func.func @transform_4(%arg0: i32, %arg1: i32) -> (i32, i32, i32) {
    %c0_i32 = arith.constant 0 : i32
    %c0_i32_0 = arith.constant 0 : i32
    return %arg0, %arg1, %c0_i32 : i32, i32, i32
  }
}

</mosaic_0001>

<llo_original>
// kernel: tpu_custom_call.1
$region0: #{tpu_custom_call.1}
  #allocation0 [shape = 'u32[]', space=smem, size = 0x4, offset = 0x4, fixed_abs, tag = 'smem constant byte address 0x4 - core index']
  #allocation1 [shape = 'u32[144,128]{1,0:T(1,128)}', space=vmem, size = 0x12000, scoped, tag = 'internal scratch']
  %s0 = inlined_call_operand.vmem [shape: f32[2,32,32], index: 0, kind: input, shape index: {}]
  %s1 = inlined_call_operand.vmem [shape: f32[4,2,32], index: 1, kind: input, shape index: {}]
  %s2 = inlined_call_operand.vmem [shape: f32[96,32], index: 2, kind: input, shape index: {}]
  %s3 = inlined_call_operand.vmem [shape: f32[2,1,32], index: 3, kind: input, shape index: {}]
  %s4 = inlined_call_operand.hbm [shape: f32[2,32,32], index: 4, kind: output, shape index: {}]
  %s5 = sld [smem:[#allocation0]]
  $region49: #{tpu_custom_call.1} parent=0
    _
  %s7 = ssub.s32 1, %s5
  %s8 = scalar_select 0, %s7, %s5
  $region1: #{tpu_custom_call.1} parent=0
    #allocation2 [shape = 'u8[16384]{0}', space=vmem, size = 0x4000, scoped, tag = 'output window, operand 0']
    #allocation3 [shape = 's32[2]{0}', space=sflag, size = 0x8, scoped, tag = 'scoped memory for tpu_custom_call.1']
    %9 = vsyncpa [#allocation3], 0
    %s10 = scalar_lea.sflag [#allocation3], 1
    %11 = vsyncpa %s10, 0
    loop: start=0, step=1, limit=6
    $region2: #{tpu_custom_call.1} parent=1 // loop_pre_header
      _
    $region3: #{tpu_custom_call.1} parent=1 // loop_header
      %s13 = sphi 0, %s17
      %p14 = scmp.ge.s32.totalorder %s13, 6
      %s20 = sphi 0, %s32
      %s21 = sphi 0, %s28
      %s22 = sphi 0, %s20
      %s23 = sphi 0, %s21
      %s24 = sphi 0, %s22
      %s25 = sphi 0, %s23
      %s37 = sphi 0, %s39
      %s40 = sphi 0, %s37
      %s41 = sphi 0, %s40
      %s57 = sphi 0, %s41
      %s67 = sphi 0, %s69
      %s70 = sphi 0, %s67
      %s71 = sphi 0, %s70
      %s87 = sphi 0, %s71
      %s91 = sphi 0, %s91
      %s93 = sphi 0, %s91
      %s94 = sphi 0, %s93
      %s108 = sphi 0, %s94
      %s114 = sphi 0, %s116
      %s117 = sphi 0, %s114
      %s118 = sphi 0, %s117
      %s134 = sphi 0, %s118
      %s142 = sphi 0, %s144
      %s145 = sphi 0, %s142
      %s146 = sphi 0, %s145
      %s162 = sphi 0, %s146
    $region4: #{tpu_custom_call.1} parent=1 // loop_header_branch
      %16 = sbr.rel (%p14) target = $region8
    $region5: #{tpu_custom_call.1} parent=1 // loop_body
      %s18 = ssub.s32 %s13, 1
      %s19 = ssub.s32 %s13, 2
      %s26 = sadd.s32 1, %s21
      %p27 = scmp.ge.s32.totalorder %s26, 2
      %s28 = scalar_select %p27, 0, %s26
      %s29 = sadd.s32 1, %s20
      %s30 = scalar_select %p27, %s29, %s20
      %p31 = scmp.ge.s32.totalorder %s30, 2
      %s32 = scalar_select %p31, 0, %s30
      %s33 = ssub.s32 %s20, %s32
      %s34 = ssub.s32 %s21, %s28
      %s35 = sor.u32 %s33, %s34
      %p36 = scmp.eq.s32.totalorder %s35, 0
      %s38 = sadd.s32 %s37, 1
      %s39 = scalar_select %p36, %s37, %s38
      %p42 = pneg %p36
      %p43 = scmp.eq.s32.totalorder %s13, 3
      %p44 = por %p42, %p43
      %p45 = scmp.ne.s32.totalorder %s37, %s40
      %p46 = scmp.eq.s32.totalorder %s13, 0
      %p47 = por %p45, %p46
      %p48 = scmp.ne.s32.totalorder %s37, %s40
      %p49 = scmp.eq.s32.totalorder %s18, 3
      %p50 = por %p48, %p49
      %p51 = scmp.ne.s32.totalorder %s40, %s41
      %p52 = scmp.eq.s32.totalorder %s18, 0
      %p53 = por %p51, %p52
      %p54 = scmp.ne.s32.totalorder %s40, %s41
      %p55 = scmp.eq.s32.totalorder %s19, 3
      %p56 = por %p54, %p55
      %p58 = scmp.ne.s32.totalorder %s41, %s57
      %p59 = scmp.eq.s32.totalorder %s19, 0
      %p60 = por %p58, %p59
      %s61 = smul.u32 %s20, 2
      %s62 = sadd.s32 %s61, %s21
      %s63 = smul.u32 %s32, 2
      %s64 = sadd.s32 %s63, %s28
      %s65 = ssub.s32 %s62, %s64
      %p66 = scmp.eq.s32.totalorder %s65, 0
      %s68 = sadd.s32 %s67, 1
      %s69 = scalar_select %p66, %s67, %s68
      %p72 = pneg %p66
      %p73 = scmp.eq.s32.totalorder %s13, 3
      %p74 = por %p72, %p73
      %p75 = scmp.ne.s32.totalorder %s67, %s70
      %p76 = scmp.eq.s32.totalorder %s13, 0
      %p77 = por %p75, %p76
      %p78 = scmp.ne.s32.totalorder %s67, %s70
      %p79 = scmp.eq.s32.totalorder %s18, 3
      %p80 = por %p78, %p79
      %p81 = scmp.ne.s32.totalorder %s70, %s71
      %p82 = scmp.eq.s32.totalorder %s18, 0
      %p83 = por %p81, %p82
      %p84 = scmp.ne.s32.totalorder %s70, %s71
      %p85 = scmp.eq.s32.totalorder %s19, 3
      %p86 = por %p84, %p85
      %p88 = scmp.ne.s32.totalorder %s71, %s87
      %p89 = scmp.eq.s32.totalorder %s19, 0
      %p90 = por %p88, %p89
      %s92 = sadd.s32 %s91, 1
      %p95 = scmp.eq.s32.totalorder %s13, 3
      %p96 = scmp.ne.s32.totalorder %s91, %s93
      %p97 = scmp.eq.s32.totalorder %s13, 0
      %p98 = por %p96, %p97
      %p99 = scmp.ne.s32.totalorder %s91, %s93
      %p100 = scmp.eq.s32.totalorder %s18, 3
      %p101 = por %p99, %p100
      %p102 = scmp.ne.s32.totalorder %s93, %s94
      %p103 = scmp.eq.s32.totalorder %s18, 0
      %p104 = por %p102, %p103
      %p105 = scmp.ne.s32.totalorder %s93, %s94
      %p106 = scmp.eq.s32.totalorder %s19, 3
      %p107 = por %p105, %p106
      %p109 = scmp.ne.s32.totalorder %s94, %s108
      %p110 = scmp.eq.s32.totalorder %s19, 0
      %p111 = por %p109, %p110
      %s112 = ssub.s32 %s20, %s32
      %p113 = scmp.eq.s32.totalorder %s112, 0
      %s115 = sadd.s32 %s114, 1
      %s116 = scalar_select %p113, %s114, %s115
      %p119 = pneg %p113
      %p120 = scmp.eq.s32.totalorder %s13, 3
      %p121 = por %p119, %p120
      %p122 = scmp.ne.s32.totalorder %s114, %s117
      %p123 = scmp.eq.s32.totalorder %s13, 0
      %p124 = por %p122, %p123
      %p125 = scmp.ne.s32.totalorder %s114, %s117
      %p126 = scmp.eq.s32.totalorder %s18, 3
      %p127 = por %p125, %p126
      %p128 = scmp.ne.s32.totalorder %s117, %s118
      %p129 = scmp.eq.s32.totalorder %s18, 0
      %p130 = por %p128, %p129
      %p131 = scmp.ne.s32.totalorder %s117, %s118
      %p132 = scmp.eq.s32.totalorder %s19, 3
      %p133 = por %p131, %p132
      %p135 = scmp.ne.s32.totalorder %s118, %s134
      %p136 = scmp.eq.s32.totalorder %s19, 0
      %p137 = por %p135, %p136
      %s138 = ssub.s32 %s20, %s32
      %s139 = ssub.s32 %s21, %s28
      %s140 = sor.u32 %s138, %s139
      %p141 = scmp.eq.s32.totalorder %s140, 0
      %s143 = sadd.s32 %s142, 1
      %s144 = scalar_select %p141, %s142, %s143
      %p147 = pneg %p141
      %p148 = scmp.eq.s32.totalorder %s13, 3
      %p149 = por %p147, %p148
      %p150 = scmp.ne.s32.totalorder %s142, %s145
      %p151 = scmp.eq.s32.totalorder %s13, 0
      %p152 = por %p150, %p151
      %p153 = scmp.ne.s32.totalorder %s142, %s145
      %p154 = scmp.eq.s32.totalorder %s18, 3
      %p155 = por %p153, %p154
      %p156 = scmp.ne.s32.totalorder %s145, %s146
      %p157 = scmp.eq.s32.totalorder %s18, 0
      %p158 = por %p156, %p157
      %p159 = scmp.ne.s32.totalorder %s145, %s146
      %p160 = scmp.eq.s32.totalorder %s19, 3
      %p161 = por %p159, %p160
      %p163 = scmp.ne.s32.totalorder %s146, %s162
      %p164 = scmp.eq.s32.totalorder %s19, 0
      %p165 = por %p163, %p164
      %p166 = scmp.le.s32.totalorder 1, %s13
      %p167 = scmp.lt.s32.totalorder %s13, 5
      %p168 = pnand %p166, %p167
      %p169 = pneg %p168
      // Predicated region
      $region9: #{tpu_custom_call.1} parent=5 // pred_check
        _
      $region10: #{tpu_custom_call.1} parent=5 // pred_check_branch
        %171 = sbr.rel (%p168) target = $region12
      $region11: #{tpu_custom_call.1} parent=5 // pred_region
        %s172 = ssub.s32 %s13, 1
        // Predicated region
        $region13: #{tpu_custom_call.1} parent=11 // pred_check
          %p173 = pneg %p104
        $region14: #{tpu_custom_call.1} parent=11 // pred_check_branch
          %175 = sbr.rel (%p173) target = $region16
        $region15: #{tpu_custom_call.1} parent=11 // pred_region
          _
        $region16: #{tpu_custom_call.1} parent=11 // pred_fallthru
          _
      $region12: #{tpu_custom_call.1} parent=5 // pred_fallthru
        _
      %p176 = scmp.lt.s32.totalorder %s13, 4
      // Predicated region
      $region17: #{tpu_custom_call.1} parent=5 // pred_check
        %p177 = pneg %p176
      $region18: #{tpu_custom_call.1} parent=5 // pred_check_branch
        %179 = sbr.rel (%p177) target = $region20
      $region19: #{tpu_custom_call.1} parent=5 // pred_region
        // Predicated region
        $region21: #{tpu_custom_call.1} parent=19 // pred_check
          %p180 = pneg %p47
        $region22: #{tpu_custom_call.1} parent=19 // pred_check_branch
          %182 = sbr.rel (%p180) target = $region24
        $region23: #{tpu_custom_call.1} parent=19 // pred_region
          %s183 = smul.u32 2, %s21
          %p184 = scmp.lt.s32.totalorder %s20, 1
          %s185 = scalar_select %p184, %s20, 1
          %p186 = scmp.lt.s32.totalorder %s183, 3
          %s187 = scalar_select %p186, %s183, 3
          %s188 = smul.addr %s185, 4
          %s189 = sadd.s32 %s187, %s188
          %s190 = smul.addr %s189, 8
          %s191 = scalar_lea.vmem %s0, %s190
          %s192 = smul.u32 2, %s21
        $region24: #{tpu_custom_call.1} parent=19 // pred_fallthru
          _
        // Predicated region
        $region25: #{tpu_custom_call.1} parent=19 // pred_check
          %p193 = pneg %p77
        $region26: #{tpu_custom_call.1} parent=19 // pred_check_branch
          %195 = sbr.rel (%p193) target = $region28
        $region27: #{tpu_custom_call.1} parent=19 // pred_region
          %s196 = smul.u32 %s20, 2
          %s197 = sadd.s32 %s196, %s21
          %p198 = scmp.lt.s32.totalorder %s197, 3
          %s199 = scalar_select %p198, %s197, 3
          %s200 = smul.addr %s199, 2
          %s201 = scalar_lea.vmem %s1, %s200
          %s202 = smul.u32 %s20, 2
          %s203 = sadd.s32 %s202, %s21
        $region28: #{tpu_custom_call.1} parent=19 // pred_fallthru
          _
        // Predicated region
        $region29: #{tpu_custom_call.1} parent=19 // pred_check
          %p204 = pneg %p124
        $region30: #{tpu_custom_call.1} parent=19 // pred_check_branch
          %206 = sbr.rel (%p204) target = $region32
        $region31: #{tpu_custom_call.1} parent=19 // pred_region
          %p207 = scmp.lt.s32.totalorder %s20, 1
          %s208 = scalar_select %p207, %s20, 1
          %s209 = scalar_lea.vmem %s3, %s208
        $region32: #{tpu_custom_call.1} parent=19 // pred_fallthru
          _
      $region20: #{tpu_custom_call.1} parent=5 // pred_fallthru
        _
      %p210 = scmp.le.s32.totalorder 1, %s13
      %p211 = scmp.lt.s32.totalorder %s13, 5
      %p212 = pnand %p210, %p211
      %p213 = pneg %p212
      // Predicated region
      $region33: #{tpu_custom_call.1} parent=5 // pred_check
        _
      $region34: #{tpu_custom_call.1} parent=5 // pred_check_branch
        %215 = sbr.rel (%p212) target = $region36
      $region35: #{tpu_custom_call.1} parent=5 // pred_region
        %s216 = ssub.s32 %s13, 1
        %s217 = smul.u32 2, %s23
        %p218 = scmp.lt.s32.totalorder %s22, 1
        %s219 = scalar_select %p218, %s22, 1
        %p220 = scmp.lt.s32.totalorder %s217, 3
        %s221 = scalar_select %p220, %s217, 3
        %s222 = smul.addr %s219, 4
        %s223 = sadd.s32 %s221, %s222
        %s224 = smul.addr %s223, 8
        %s225 = scalar_lea.vmem %s0, %s224
        %p226 = pneg %p53
        %p227 = pneg %p50
        %s228 = smul.u32 %s22, 2
        %s229 = sadd.s32 %s228, %s23
        %p230 = scmp.lt.s32.totalorder %s229, 3
        %s231 = scalar_select %p230, %s229, 3
        %s232 = smul.addr %s231, 2
        %s233 = scalar_lea.vmem %s1, %s232
        %p234 = pneg %p83
        %p235 = pneg %p80
        %p236 = pneg %p104
        %p237 = pneg %p101
        %p238 = scmp.lt.s32.totalorder %s22, 1
        %s239 = scalar_select %p238, %s22, 1
        %s240 = scalar_lea.vmem %s3, %s239
        %p241 = pneg %p130
        %p242 = pneg %p127
        %p243 = pneg %p158
        %p244 = pneg %p155
        %s245 = sand.u32 %s145, 1
        %s246 = scalar_lea.sflag [#allocation3], %s245
        %s247 = sand.u32 %s145, 1
        %s248 = smul.addr %s247, 16
        %s249 = scalar_lea.vmem [#allocation2], %s248
        %s250 = smul.u32 2, %s23
        %p251 = scmp.lt.s32.totalorder %s22, 1
        %s252 = scalar_select %p251, %s22, 1
        %p253 = scmp.lt.s32.totalorder %s250, 3
        %s254 = scalar_select %p253, %s250, 3
        %s255 = smul.addr %s252, 4
        %s256 = sadd.s32 %s254, %s255
        %s257 = smul.addr %s256, 8
        %s258 = scalar_lea.vmem %s0, %s257
        %s259 = smul.u32 2, %s23
        %s260 = smul.u32 %s22, 2
        %s261 = sadd.s32 %s260, %s23
        %p262 = scmp.lt.s32.totalorder %s261, 3
        %s263 = scalar_select %p262, %s261, 3
        %s264 = smul.addr %s263, 2
        %s265 = scalar_lea.vmem %s1, %s264
        %s266 = smul.u32 %s22, 2
        %s267 = sadd.s32 %s266, %s23
        %p268 = scmp.lt.s32.totalorder %s22, 1
        %s269 = scalar_select %p268, %s22, 1
        %s270 = scalar_lea.vmem %s3, %s269
        %s271 = smul.u32 2, %s23
        %v272 = vld [vmem:[%s258] sm:$0xff]
        %v273 = vld [vmem:[%s258 + $0x8] sm:$0xff]
        %v274 = vld [vmem:[%s265] sm:$0x3]
        %vm277 = vcmask 1040384
        %v278 = vrot.slane %v272, 7
        %v279 = vrot.slane %v273, 7
        %v280 = vsel %vm277, %v278, %v279
        %v284 = vsel %vm277, %v274, %v278
        %v285 = vsel %vm277, %v279, %v274
        %vm288 = vcmask 1046528
        %v289 = vrot.slane %v284, 1
        %v290 = vrot.slane %v280, 1
        %v291 = vsel %vm288, %v289, %v290
        %v292 = vrot.slane %v285, 1
        %v293 = vsel %vm288, %v290, %v292
        %294 = vrot.lane.b32.xlu0 %v291, 32
        %v295 = vpop.permute.xlu0 %294
        %296 = vrot.lane.b32.xlu0 %v293, 32
        %v297 = vpop.permute.xlu0 %296
        %vm300 = vcmask 1045504
        %v301 = vrot.slane %v284, 2
        %v302 = vrot.slane %v280, 2
        %v303 = vsel %vm300, %v301, %v302
        %v304 = vrot.slane %v285, 2
        %v305 = vsel %vm300, %v302, %v304
        %306 = vrot.lane.b32.xlu0 %v303, 64
        %v307 = vpop.permute.xlu0 %306
        %308 = vrot.lane.b32.xlu0 %v305, 64
        %v309 = vpop.permute.xlu0 %308
        %vm312 = vcmask 261120
        %v313 = vsel %vm312, %v284, %v295
        %v314 = vsel %vm312, %v280, %v297
        %vm315 = vcmask 523264
        %v316 = vsel %vm315, %v313, %v307
        %v317 = vsel %vm315, %v314, %v309
        %v318 = vld [vmem:[%s2] sm:$0xff]
        %v319 = vld [vmem:[%s2 + $0x8] sm:$0xff]
        %v320 = vld [vmem:[%s2 + $0x10] sm:$0xff]
        %v321 = vld [vmem:[%s2 + $0x18] sm:$0xff]
        %v322 = vld [vmem:[%s2 + $0x20] sm:$0xff]
        %v323 = vld [vmem:[%s2 + $0x28] sm:$0xff]
        %v324 = vld [vmem:[%s2 + $0x30] sm:$0xff]
        %v325 = vld [vmem:[%s2 + $0x38] sm:$0xff]
        %v326 = vld [vmem:[%s2 + $0x40] sm:$0xff]
        %v327 = vld [vmem:[%s2 + $0x48] sm:$0xff]
        %v328 = vld [vmem:[%s2 + $0x50] sm:$0xff]
        %v329 = vld [vmem:[%s2 + $0x58] sm:$0xff]
        %v330 = vld [vmem:[%s270] sm:$0x1]
        %v332 = vlaneseq
        %v333 = vshrl.u32 %v332, 7
        %v334 = vsub.s32 0, %v333
        %v335 = vrot.slane %v330, %v334
        %vm337 = vcmask 785408
        %v339 = vsel %vm337, %v316, 0
        %v342 = vsel %vm337, %v317, 0
        %344 = vmatprep.subr.mxu0 0.0
        %345 = vmatpush1.msra.mxu0 %v318
        %346 = vmatprep.subr.mxu0 0.0
        %347 = vmatpush1.msra.mxu0 %v319
        %348 = vmatprep.subr.mxu0 0.0
        %349 = vmatpush1.msra.mxu0 %v320
        %350 = vmatprep.subr.mxu0 0.0
        %351 = vmatpush1.msra.mxu0 %v321
        %352 = vmatprep.subr.mxu0 0.0
        %353 = vmatpush1.msra.mxu0 %v322
        %354 = vmatprep.subr.mxu0 0.0
        %355 = vmatpush1.msra.mxu0 %v323
        %356 = vmatprep.subr.mxu0 0.0
        %357 = vmatpush1.msra.mxu0 %v324
        %358 = vmatprep.subr.mxu0 0.0
        %359 = vmatpush1.msra.mxu0 %v325
        %360 = vmatprep.subr.mxu0 0.0
        %361 = vmatpush1.msra.mxu0 %v326
        %362 = vmatprep.subr.mxu0 0.0
        %363 = vmatpush1.msra.mxu0 %v327
        %364 = vmatprep.subr.mxu0 0.0
        %365 = vmatpush1.msra.mxu0 %v328
        %366 = vmatprep.subr.mxu0 0.0
        %367 = vmatpush1.msra.mxu0 %v329
        %368 = vmatprep.subr.mxu0 0.0
        %369 = vmatpush1.msra.mxu0 0.0
        %370 = vmatprep.subr.mxu0 0.0
        %371 = vmatpush1.msra.mxu0 0.0
        %372 = vmatprep.subr.mxu0 0.0
        %373 = vmatpush1.msra.mxu0 0.0
        %374 = vmatprep.subr.mxu0 0.0
        %375 = vmatpush1.msra.mxu0 0.0
        %376 = vmatprep.subr.mxu0 0.0
        %377 = vmatpush1.msra.mxu0 0.0
        %378 = vmatprep.subr.mxu0 0.0
        %379 = vmatpush1.msra.mxu0 0.0
        %380 = vmatprep.subr.mxu0 0.0
        %381 = vmatpush1.msra.mxu0 0.0
        %382 = vmatprep.subr.mxu0 0.0
        %383 = vmatpush1.msra.mxu0 0.0
        %384 = vmatprep.subr.mxu0 0.0
        %385 = vmatpush1.msra.mxu0 0.0
        %386 = vmatprep.subr.mxu0 0.0
        %387 = vmatpush1.msra.mxu0 0.0
        %388 = vmatprep.subr.mxu0 0.0
        %389 = vmatpush1.msra.mxu0 0.0
        %390 = vmatprep.subr.mxu0 0.0
        %391 = vmatpush1.msra.mxu0 0.0
        %392 = vmatprep.subr.mxu0 0.0
        %393 = vmatpush1.msra.mxu0 0.0
        %394 = vmatprep.subr.mxu0 0.0
        %395 = vmatpush1.msra.mxu0 0.0
        %396 = vmatprep.subr.mxu0 0.0
        %397 = vmatpush1.msra.mxu0 0.0
        %398 = vmatprep.subr.mxu0 0.0
        %399 = vmatpush1.msra.mxu0 0.0
        %400 = vmatprep.subr.mxu0 0.0
        %401 = vmatpush1.msra.mxu0 0.0
        %402 = vmatprep.subr.mxu0 0.0
        %403 = vmatpush1.msra.mxu0 0.0
        %404 = vmatprep.subr.mxu0 0.0
        %405 = vmatpush1.msra.mxu0 0.0
        %406 = vmatprep.subr.mxu0 0.0
        %407 = vmatpush1.msra.mxu0 0.0
        %408 = vmatprep.mubr.f32.mxu0 0.0
        %409 = vmatmul.mubr.f32.gmra.mrb[0].mxu0 %v339
        %v410 = vpop.f32.mrb[0].mxu0
        %v411 = vadd.f32 %v335, %v410
        %v412 = vpop.f32.mrb[0].mxu0
        %413 = vmatprep.mubr.f32.mxu0 0.0
        %414 = vmatmul.mubr.f32.gmra.mrb[0].mxu0 %v342
        %v415 = vpop.f32.mrb[0].mxu0
        %v416 = vadd.f32 %v335, %v415
        %v417 = vpop.f32.mrb[0].mxu0
        %418 = vdwg.mxu0
        %v419 = vmax.f32 %v411, 0.0
        %v420 = vmax.f32 %v416, 0.0
        %421 = vst.msk [vmem:[%s249] sm:$0xff] %vm312, %v419
        %422 = vst.msk [vmem:[%s249 + $0x8] sm:$0xff] %vm312, %v420
        %s423 = sand.u32 %s145, 1
        %s424 = scalar_lea.sflag [#allocation3], %s423
        %s425 = sand.u32 %s145, 1
        %s426 = smul.addr %s425, 16
        %s427 = scalar_lea.vmem [#allocation2], %s426
        // Predicated region
        $region37: #{tpu_custom_call.1} parent=35 // pred_check
          %p428 = pneg %p155
        $region38: #{tpu_custom_call.1} parent=35 // pred_check_branch
          %430 = sbr.rel (%p428) target = $region40
        $region39: #{tpu_custom_call.1} parent=35 // pred_region
          %s431 = smul.u32 2, %s23
          %s433 = ssub.s32 256, 256
          %434 = vsyncadd %s424, %s433
          %s435 = smul.addr %s22, 4
          %s436 = sadd.s32 %s431, %s435
          %s437 = smul.addr %s436, 128
          %s438 = scalar_lea.hbm %s4, %s437
          %s439 = sshll.u32 %s427, 4
          %s440 = int_to_ptr.vmem [resolvable:$true] %s439
          %445 = dma.vmem_to_hbm [thread:$0]  %s440, 256, %s438, %s424, 128, 128, 8
        $region40: #{tpu_custom_call.1} parent=35 // pred_fallthru
          _
      $region36: #{tpu_custom_call.1} parent=5 // pred_fallthru
        _
      %p446 = scmp.le.s32.totalorder 2, %s13
      // Predicated region
      $region41: #{tpu_custom_call.1} parent=5 // pred_check
        %p447 = pneg %p446
      $region42: #{tpu_custom_call.1} parent=5 // pred_check_branch
        %449 = sbr.rel (%p447) target = $region44
      $region43: #{tpu_custom_call.1} parent=5 // pred_region
        %s450 = ssub.s32 %s13, 2
        // Predicated region
        $region45: #{tpu_custom_call.1} parent=43 // pred_check
          %p451 = pneg %p161
        $region46: #{tpu_custom_call.1} parent=43 // pred_check_branch
          %453 = sbr.rel (%p451) target = $region48
        $region47: #{tpu_custom_call.1} parent=43 // pred_region
          %s454 = sand.u32 %s146, 1
          %s455 = scalar_lea.sflag [#allocation3], %s454
          %s456 = sand.u32 %s146, 1
          %s457 = smul.addr %s456, 16
          %s458 = scalar_lea.vmem [#allocation2], %s457
          %459 = dma.done %s455, 256
        $region48: #{tpu_custom_call.1} parent=43 // pred_fallthru
          _
      $region44: #{tpu_custom_call.1} parent=5 // pred_fallthru
        _
    $region6: #{tpu_custom_call.1} parent=1 // loop_footer
      %s17 = sadd.s32 1, %s13
    $region7: #{tpu_custom_call.1} parent=1 // loop_footer_branch
      %12 = sbr.rel target = $region3
    $region8: #{tpu_custom_call.1} parent=1 // loop_exit
      _
    %460 = vsyncpa [#allocation3], 1
    %s461 = scalar_lea.sflag [#allocation3], 1
    %462 = vsyncpa %s461, 1

</llo_original>
